<compile_context>
chip_gen: v7x
topology: tpu7x:2x2x1
jax: 0.10.0
libtpu: 0.0.40
codegen_flags: <defaults>
</compile_context>

<pallas_src>
import functools

import jax
import jax.numpy as jnp
from jax.experimental import pallas as pl
from jax.experimental.pallas import tpu as pltpu


def _round_up(a: int, b: int) -> int:
    return (a + b - 1) // b * b


def lora_kernel(x_ref, wa_ref, wb_ref, lam_ref, o_ref):
    # Two matmuls + tanh + broadcast add, all on the current (TM, dim) tile.
    h = jnp.dot(x_ref[...], wa_ref[...], preferred_element_type=jnp.float32)
    h = jnp.tanh(h)
    # Cast the activation back to the weight dtype for the second MXU pass
    # (no-op in f32; tiny precision loss vs fp32 reference if bf16 weights).
    y = jnp.dot(h.astype(wb_ref.dtype), wb_ref[...],
                preferred_element_type=jnp.float32)
    o_ref[...] = (lam_ref[...] + y).astype(o_ref.dtype)


@jax.jit
def lora_forward(x, wa, wb, lambd):
    """x: (..., dim); wa: (dim, lora_dim); wb: (lora_dim, dim); lambd: (dim,)."""
    orig_shape = x.shape
    dim = orig_shape[-1]
    lora_dim = wa.shape[-1]

    x2 = x.reshape(-1, dim)                       # (M, dim)
    m = x2.shape[0]
    itemsize = jnp.dtype(x.dtype).itemsize

    # ---- lane-dense padding (exact: tanh(0)=0, padded Wb rows are zero) ----
    dim_p = _round_up(dim, 128)
    r_p = _round_up(lora_dim, 128)

    # ---- M tiling: biggest tile that fits comfortably in scoped VMEM -------
    tm_target = 512 if itemsize <= 2 else 256     # rows per tile
    m_pad8 = _round_up(max(m, 8), 8)
    tm = min(tm_target, m_pad8)                   # both are multiples of 8
    m_p = _round_up(m_pad8, tm)
    grid_m = m_p // tm

    # ---- zero-pad operands --------------------------------------------------
    x_p = jnp.pad(x2, ((0, m_p - m), (0, dim_p - dim)))
    wa_p = jnp.pad(wa, ((0, dim_p - dim), (0, r_p - lora_dim)))
    wb_p = jnp.pad(wb, ((0, r_p - lora_dim), (0, dim_p - dim)))
    lam_p = jnp.pad(lambd, (0, dim_p - dim)).reshape(1, dim_p)

    # ---- VMEM budget: 2x(x tile) + 2x(out tile) + 2x weights + headroom ----
    tile_bytes = tm * dim_p * itemsize
    w_bytes = 2 * dim_p * r_p * itemsize
    budget = 4 * tile_bytes + 2 * w_bytes + 2 * dim_p * itemsize + (4 << 20)
    vmem_limit = int(min(max(budget, 32 << 20), 64 << 20))   # v7x-safe cap

    cost = pl.CostEstimate(
        flops=4 * m_p * dim_p * r_p,
        transcendentals=m_p * r_p,
        bytes_accessed=(2 * m_p * dim_p + 2 * dim_p * r_p + dim_p) * itemsize,
    )

    out = pl.pallas_call(
        lora_kernel,
        out_shape=jax.ShapeDtypeStruct((m_p, dim_p), x.dtype),
        grid_spec=pl.GridSpec(
            grid=(grid_m,),
            in_specs=[
                pl.BlockSpec((tm, dim_p), lambda i: (i, 0)),     # x tile
                pl.BlockSpec((dim_p, r_p), lambda i: (0, 0)),    # Wa (resident)
                pl.BlockSpec((r_p, dim_p), lambda i: (0, 0)),    # Wb (resident)
                pl.BlockSpec((1, dim_p), lambda i: (0, 0)),      # lambd row
            ],
            out_specs=pl.BlockSpec((tm, dim_p), lambda i: (i, 0)),
        ),
        compiler_params=pltpu.CompilerParams(
            dimension_semantics=("parallel",),
            vmem_limit_bytes=vmem_limit,
        ),
        cost_estimate=cost,
    )(x_p, wa_p, wb_p, lam_p)

    return out[:m, :dim].reshape(orig_shape)


if __name__ == "__main__":
    # Small shapes implied by the module: x has trailing dim = `dim`.
    # TODO(synk): at shapes this tiny, XLA fusion would beat a dedicated
    # kernel; this script exercises the kernel path for correctness.
    batch, seq, dim, lora_dim = 2, 8, 32, 8

    key = jax.random.PRNGKey(0)
    kx, ka, kb, kl = jax.random.split(key, 4)

    # Deterministic parameter init mirroring the PyTorch __init__:
    #   a.weight ~ N(0, 0.001), shape (lora_dim, dim)
    #   b.weight ~ N(0, 0.001), shape (dim, lora_dim)
    #   lambd    ~ N(0, 1),     shape (dim,)
    a_weight = 0.001 * jax.random.normal(ka, (lora_dim, dim), jnp.float32)
    b_weight = 0.001 * jax.random.normal(kb, (dim, lora_dim), jnp.float32)
    lambd = jax.random.normal(kl, (dim,), jnp.float32)

    # Transpose once (glue) so the kernel does plain row-major matmuls.
    wa = a_weight.T        # (dim, lora_dim)
    wb = b_weight.T        # (lora_dim, dim)

    x = jax.random.normal(kx, (batch, seq, dim), jnp.float32)

    out = lora_forward(x, wa, wb, lambd)
    out = jax.block_until_ready(out)

    # Pure-JAX reference check.
    ref = lambd + jnp.tanh(x @ a_weight.T) @ b_weight.T
    assert out.shape == (batch, seq, dim)
    assert jnp.allclose(out, ref, atol=1e-5, rtol=1e-5)

    print("KERNEL_OK")
</pallas_src>

<mosaic_0001>
module attributes {stable_mosaic.version = 11 : i64} {
  func.func @lora_kernel(%arg0: i32, %arg1: memref<16x128xf32, #tpu.memory_space<vmem>>, %arg2: memref<128x128xf32, #tpu.memory_space<vmem>>, %arg3: memref<128x128xf32, #tpu.memory_space<vmem>>, %arg4: memref<1x128xf32, #tpu.memory_space<vmem>>, %arg5: memref<16x128xf32, #tpu.memory_space<vmem>>) attributes {dimension_semantics = [#tpu.dimension_semantics<parallel>], iteration_bounds = array<i64: 1>, scalar_prefetch = 0 : i64, scratch_operands = 0 : i64, tpu.core_type = #tpu.core_type<tc>, window_params = [{transform_indices = @transform_0, window_bounds = array<i64: 16, 128>}, {pipeline_mode = #tpu.pipeline_mode<synchronous>, transform_indices = @transform_1, window_bounds = array<i64: 128, 128>}, {pipeline_mode = #tpu.pipeline_mode<synchronous>, transform_indices = @transform_2, window_bounds = array<i64: 128, 128>}, {pipeline_mode = #tpu.pipeline_mode<synchronous>, transform_indices = @transform_3, window_bounds = array<i64: 1, 128>}, {transform_indices = @transform_4, window_bounds = array<i64: 16, 128>}]} {
    %c0 = arith.constant 0 : index
    %c0_0 = arith.constant 0 : index
    %0 = vector.load %arg1[%c0, %c0_0] : memref<16x128xf32, #tpu.memory_space<vmem>>, vector<16x128xf32>
    %c0_1 = arith.constant 0 : index
    %c0_2 = arith.constant 0 : index
    %1 = vector.load %arg2[%c0_1, %c0_2] : memref<128x128xf32, #tpu.memory_space<vmem>>, vector<128x128xf32>
    %cst = arith.constant dense<0.000000e+00> : vector<16x128xf32>
    %2 = tpu.matmul %0, %1, %cst {dimension_numbers = #tpu.dot_dimension_numbers<[1], [0], [0], [1], [0, 0, 1, 1], [], []>} : vector<16x128xf32>, vector<128x128xf32>, vector<16x128xf32> -> vector<16x128xf32>
    %3 = math.tanh %2 : vector<16x128xf32>
    %c0_3 = arith.constant 0 : index
    %c0_4 = arith.constant 0 : index
    %4 = vector.load %arg3[%c0_3, %c0_4] : memref<128x128xf32, #tpu.memory_space<vmem>>, vector<128x128xf32>
    %cst_5 = arith.constant dense<0.000000e+00> : vector<16x128xf32>
    %5 = tpu.matmul %3, %4, %cst_5 {dimension_numbers = #tpu.dot_dimension_numbers<[1], [0], [0], [1], [0, 0, 1, 1], [], []>} : vector<16x128xf32>, vector<128x128xf32>, vector<16x128xf32> -> vector<16x128xf32>
    %c0_6 = arith.constant 0 : index
    %c0_7 = arith.constant 0 : index
    %6 = vector.load %arg4[%c0_6, %c0_7] : memref<1x128xf32, #tpu.memory_space<vmem>>, vector<1x128xf32>
    %7 = vector.broadcast %6 : vector<1x128xf32> to vector<16x128xf32>
    %8 = arith.addf %7, %5 : vector<16x128xf32>
    %c0_8 = arith.constant 0 : index
    %c0_9 = arith.constant 0 : index
    %9 = vector.load %arg5[%c0_8, %c0_9] : memref<16x128xf32, #tpu.memory_space<vmem>>, vector<16x128xf32>
    tpu.vector_store %arg5[%c0_8, %c0_9], %8 {strides = array<i32>} : memref<16x128xf32, #tpu.memory_space<vmem>>, vector<16x128xf32>,
    return
  }
  func.func @transform_0(%arg0: i32) -> (i32, i32) {
    %c0_i32 = arith.constant 0 : i32
    %c0_i32_0 = arith.constant 0 : i32
    return %arg0, %c0_i32 : i32, i32
  }
  func.func @transform_1(%arg0: i32) -> (i32, i32) {
    %c0_i32 = arith.constant 0 : i32
    %c0_i32_0 = arith.constant 0 : i32
    %c0_i32_1 = arith.constant 0 : i32
    return %c0_i32, %c0_i32_0 : i32, i32
  }
  func.func @transform_2(%arg0: i32) -> (i32, i32) {
    %c0_i32 = arith.constant 0 : i32
    %c0_i32_0 = arith.constant 0 : i32
    %c0_i32_1 = arith.constant 0 : i32
    return %c0_i32, %c0_i32_0 : i32, i32
  }
  func.func @transform_3(%arg0: i32) -> (i32, i32) {
    %c0_i32 = arith.constant 0 : i32
    %c0_i32_0 = arith.constant 0 : i32
    %c0_i32_1 = arith.constant 0 : i32
    return %c0_i32, %c0_i32_0 : i32, i32
  }
  func.func @transform_4(%arg0: i32) -> (i32, i32) {
    %c0_i32 = arith.constant 0 : i32
    %c0_i32_0 = arith.constant 0 : i32
    return %arg0, %c0_i32 : i32, i32
  }
}

</mosaic_0001>

<llo_original>
// kernel: lora_forward.1
$region0: #{lora_forward.1}
  #allocation0 [shape = 'u32[]', space=smem, size = 0x4, offset = 0x4, fixed_abs, tag = 'smem constant byte address 0x4 - core index']
  #allocation1 [shape = 'u32[144,128]{1,0:T(1,128)}', space=vmem, size = 0x12000, scoped, tag = 'internal scratch']
  %s0 = inlined_call_operand.vmem [shape: f32[16,128], index: 0, kind: input, shape index: {}]
  %s1 = inlined_call_operand.vmem [shape: f32[128,128], index: 1, kind: input, shape index: {}]
  %s2 = inlined_call_operand.vmem [shape: f32[128,128], index: 2, kind: input, shape index: {}]
  %s3 = inlined_call_operand.vmem [shape: f32[1,128], index: 3, kind: input, shape index: {}]
  %s4 = inlined_call_operand.vmem [shape: f32[16,128], index: 4, kind: output, shape index: {}]
  %s5 = sld [smem:[#allocation0]]
  $region26: #{lora_forward.1} parent=0
    _
  %s7 = ssub.s32 1, %s5
  %s8 = scalar_select 0, %s7, %s5
  // Predicated region
  $region2: #{lora_forward.1} parent=0 // pred_check
    _
  $region3: #{lora_forward.1} parent=0 // pred_check_branch
    %10 = sbr.rel (0) target = $region5
  $region4: #{lora_forward.1} parent=0 // pred_region
    _
  $region5: #{lora_forward.1} parent=0 // pred_fallthru
    _
  // Predicated region
  $region6: #{lora_forward.1} parent=0 // pred_check
    _
  $region7: #{lora_forward.1} parent=0 // pred_check_branch
    %12 = sbr.rel (0) target = $region9
  $region8: #{lora_forward.1} parent=0 // pred_region
    _
  $region9: #{lora_forward.1} parent=0 // pred_fallthru
    _
  // Predicated region
  $region10: #{lora_forward.1} parent=0 // pred_check
    _
  $region11: #{lora_forward.1} parent=0 // pred_check_branch
    %14 = sbr.rel (0) target = $region13
  $region12: #{lora_forward.1} parent=0 // pred_region
    _
  $region13: #{lora_forward.1} parent=0 // pred_fallthru
    _
  // Predicated region
  $region14: #{lora_forward.1} parent=0 // pred_check
    _
  $region15: #{lora_forward.1} parent=0 // pred_check_branch
    %16 = sbr.rel (0) target = $region17
  $region16: #{lora_forward.1} parent=0 // pred_region
    _
  $region17: #{lora_forward.1} parent=0 // pred_fallthru
    _
  %v17 = vld [vmem:[%s0] sm:$0xff]
  %v18 = vld [vmem:[%s0 + $0x8] sm:$0xff]
  %v19 = vld [vmem:[%s1] sm:$0xff]
  %v20 = vld [vmem:[%s1 + $0x8] sm:$0xff]
  %v21 = vld [vmem:[%s1 + $0x10] sm:$0xff]
  %v22 = vld [vmem:[%s1 + $0x18] sm:$0xff]
  %v23 = vld [vmem:[%s1 + $0x20] sm:$0xff]
  %v24 = vld [vmem:[%s1 + $0x28] sm:$0xff]
  %v25 = vld [vmem:[%s1 + $0x30] sm:$0xff]
  %v26 = vld [vmem:[%s1 + $0x38] sm:$0xff]
  %v27 = vld [vmem:[%s1 + $0x40] sm:$0xff]
  %v28 = vld [vmem:[%s1 + $0x48] sm:$0xff]
  %v29 = vld [vmem:[%s1 + $0x50] sm:$0xff]
  %v30 = vld [vmem:[%s1 + $0x58] sm:$0xff]
  %v31 = vld [vmem:[%s1 + $0x60] sm:$0xff]
  %v32 = vld [vmem:[%s1 + $0x68] sm:$0xff]
  %v33 = vld [vmem:[%s1 + $0x70] sm:$0xff]
  %v34 = vld [vmem:[%s1 + $0x78] sm:$0xff]
  %35 = vmatprep.subr.mxu0 0.0
  %36 = vmatpush1.msra.mxu0 %v19
  %37 = vmatprep.subr.mxu0 0.0
  %38 = vmatpush1.msra.mxu0 %v20
  %39 = vmatprep.subr.mxu0 0.0
  %40 = vmatpush1.msra.mxu0 %v21
  %41 = vmatprep.subr.mxu0 0.0
  %42 = vmatpush1.msra.mxu0 %v22
  %43 = vmatprep.subr.mxu0 0.0
  %44 = vmatpush1.msra.mxu0 %v23
  %45 = vmatprep.subr.mxu0 0.0
  %46 = vmatpush1.msra.mxu0 %v24
  %47 = vmatprep.subr.mxu0 0.0
  %48 = vmatpush1.msra.mxu0 %v25
  %49 = vmatprep.subr.mxu0 0.0
  %50 = vmatpush1.msra.mxu0 %v26
  %51 = vmatprep.subr.mxu0 0.0
  %52 = vmatpush1.msra.mxu0 %v27
  %53 = vmatprep.subr.mxu0 0.0
  %54 = vmatpush1.msra.mxu0 %v28
  %55 = vmatprep.subr.mxu0 0.0
  %56 = vmatpush1.msra.mxu0 %v29
  %57 = vmatprep.subr.mxu0 0.0
  %58 = vmatpush1.msra.mxu0 %v30
  %59 = vmatprep.subr.mxu0 0.0
  %60 = vmatpush1.msra.mxu0 %v31
  %61 = vmatprep.subr.mxu0 0.0
  %62 = vmatpush1.msra.mxu0 %v32
  %63 = vmatprep.subr.mxu0 0.0
  %64 = vmatpush1.msra.mxu0 %v33
  %65 = vmatprep.subr.mxu0 0.0
  %66 = vmatpush1.msra.mxu0 %v34
  %67 = vmatprep.subr.mxu0 0.0
  %68 = vmatpush1.msra.mxu0 0.0
  %69 = vmatprep.subr.mxu0 0.0
  %70 = vmatpush1.msra.mxu0 0.0
  %71 = vmatprep.subr.mxu0 0.0
  %72 = vmatpush1.msra.mxu0 0.0
  %73 = vmatprep.subr.mxu0 0.0
  %74 = vmatpush1.msra.mxu0 0.0
  %75 = vmatprep.subr.mxu0 0.0
  %76 = vmatpush1.msra.mxu0 0.0
  %77 = vmatprep.subr.mxu0 0.0
  %78 = vmatpush1.msra.mxu0 0.0
  %79 = vmatprep.subr.mxu0 0.0
  %80 = vmatpush1.msra.mxu0 0.0
  %81 = vmatprep.subr.mxu0 0.0
  %82 = vmatpush1.msra.mxu0 0.0
  %83 = vmatprep.subr.mxu0 0.0
  %84 = vmatpush1.msra.mxu0 0.0
  %85 = vmatprep.subr.mxu0 0.0
  %86 = vmatpush1.msra.mxu0 0.0
  %87 = vmatprep.subr.mxu0 0.0
  %88 = vmatpush1.msra.mxu0 0.0
  %89 = vmatprep.subr.mxu0 0.0
  %90 = vmatpush1.msra.mxu0 0.0
  %91 = vmatprep.subr.mxu0 0.0
  %92 = vmatpush1.msra.mxu0 0.0
  %93 = vmatprep.subr.mxu0 0.0
  %94 = vmatpush1.msra.mxu0 0.0
  %95 = vmatprep.subr.mxu0 0.0
  %96 = vmatpush1.msra.mxu0 0.0
  %97 = vmatprep.subr.mxu0 0.0
  %98 = vmatpush1.msra.mxu0 0.0
  %99 = vmatprep.mubr.f32.mxu0 0.0
  %100 = vmatmul.mubr.f32.gmra.mrb[0].mxu0 %v17
  %v101 = vpop.f32.mrb[0].mxu0
  %v102 = vadd.f32 0.0, %v101
  %v103 = vpop.f32.mrb[0].mxu0
  %104 = vmatprep.mubr.f32.mxu0 0.0
  %105 = vmatmul.mubr.f32.gmra.mrb[0].mxu0 %v18
  %v106 = vpop.f32.mrb[0].mxu0
  %v107 = vadd.f32 0.0, %v106
  %v108 = vpop.f32.mrb[0].mxu0
  %109 = vdwg.mxu0
  %v110 = vtanh.pop %v102
  %v111 = vtanh.pop %v107
  %v112 = vld [vmem:[%s2] sm:$0xff]
  %v113 = vld [vmem:[%s2 + $0x8] sm:$0xff]
  %v114 = vld [vmem:[%s2 + $0x10] sm:$0xff]
  %v115 = vld [vmem:[%s2 + $0x18] sm:$0xff]
  %v116 = vld [vmem:[%s2 + $0x20] sm:$0xff]
  %v117 = vld [vmem:[%s2 + $0x28] sm:$0xff]
  %v118 = vld [vmem:[%s2 + $0x30] sm:$0xff]
  %v119 = vld [vmem:[%s2 + $0x38] sm:$0xff]
  %v120 = vld [vmem:[%s2 + $0x40] sm:$0xff]
  %v121 = vld [vmem:[%s2 + $0x48] sm:$0xff]
  %v122 = vld [vmem:[%s2 + $0x50] sm:$0xff]
  %v123 = vld [vmem:[%s2 + $0x58] sm:$0xff]
  %v124 = vld [vmem:[%s2 + $0x60] sm:$0xff]
  %v125 = vld [vmem:[%s2 + $0x68] sm:$0xff]
  %v126 = vld [vmem:[%s2 + $0x70] sm:$0xff]
  %v127 = vld [vmem:[%s2 + $0x78] sm:$0xff]
  %128 = vmatprep.subr.mxu0 0.0
  %129 = vmatpush1.msra.mxu0 %v112
  %130 = vmatprep.subr.mxu0 0.0
  %131 = vmatpush1.msra.mxu0 %v113
  %132 = vmatprep.subr.mxu0 0.0
  %133 = vmatpush1.msra.mxu0 %v114
  %134 = vmatprep.subr.mxu0 0.0
  %135 = vmatpush1.msra.mxu0 %v115
  %136 = vmatprep.subr.mxu0 0.0
  %137 = vmatpush1.msra.mxu0 %v116
  %138 = vmatprep.subr.mxu0 0.0
  %139 = vmatpush1.msra.mxu0 %v117
  %140 = vmatprep.subr.mxu0 0.0
  %141 = vmatpush1.msra.mxu0 %v118
  %142 = vmatprep.subr.mxu0 0.0
  %143 = vmatpush1.msra.mxu0 %v119
  %144 = vmatprep.subr.mxu0 0.0
  %145 = vmatpush1.msra.mxu0 %v120
  %146 = vmatprep.subr.mxu0 0.0
  %147 = vmatpush1.msra.mxu0 %v121
  %148 = vmatprep.subr.mxu0 0.0
  %149 = vmatpush1.msra.mxu0 %v122
  %150 = vmatprep.subr.mxu0 0.0
  %151 = vmatpush1.msra.mxu0 %v123
  %152 = vmatprep.subr.mxu0 0.0
  %153 = vmatpush1.msra.mxu0 %v124
  %154 = vmatprep.subr.mxu0 0.0
  %155 = vmatpush1.msra.mxu0 %v125
  %156 = vmatprep.subr.mxu0 0.0
  %157 = vmatpush1.msra.mxu0 %v126
  %158 = vmatprep.subr.mxu0 0.0
  %159 = vmatpush1.msra.mxu0 %v127
  %160 = vmatprep.subr.mxu0 0.0
  %161 = vmatpush1.msra.mxu0 0.0
  %162 = vmatprep.subr.mxu0 0.0
  %163 = vmatpush1.msra.mxu0 0.0
  %164 = vmatprep.subr.mxu0 0.0
  %165 = vmatpush1.msra.mxu0 0.0
  %166 = vmatprep.subr.mxu0 0.0
  %167 = vmatpush1.msra.mxu0 0.0
  %168 = vmatprep.subr.mxu0 0.0
  %169 = vmatpush1.msra.mxu0 0.0
  %170 = vmatprep.subr.mxu0 0.0
  %171 = vmatpush1.msra.mxu0 0.0
  %172 = vmatprep.subr.mxu0 0.0
  %173 = vmatpush1.msra.mxu0 0.0
  %174 = vmatprep.subr.mxu0 0.0
  %175 = vmatpush1.msra.mxu0 0.0
  %176 = vmatprep.subr.mxu0 0.0
  %177 = vmatpush1.msra.mxu0 0.0
  %178 = vmatprep.subr.mxu0 0.0
  %179 = vmatpush1.msra.mxu0 0.0
  %180 = vmatprep.subr.mxu0 0.0
  %181 = vmatpush1.msra.mxu0 0.0
  %182 = vmatprep.subr.mxu0 0.0
  %183 = vmatpush1.msra.mxu0 0.0
  %184 = vmatprep.subr.mxu0 0.0
  %185 = vmatpush1.msra.mxu0 0.0
  %186 = vmatprep.subr.mxu0 0.0
  %187 = vmatpush1.msra.mxu0 0.0
  %188 = vmatprep.subr.mxu0 0.0
  %189 = vmatpush1.msra.mxu0 0.0
  %190 = vmatprep.subr.mxu0 0.0
  %191 = vmatpush1.msra.mxu0 0.0
  %192 = vmatprep.mubr.f32.mxu0 0.0
  %193 = vmatmul.mubr.f32.gmra.mrb[0].mxu0 %v110
  %v194 = vpop.f32.mrb[0].mxu0
  %v195 = vadd.f32 0.0, %v194
  %v196 = vpop.f32.mrb[0].mxu0
  %197 = vmatprep.mubr.f32.mxu0 0.0
  %198 = vmatmul.mubr.f32.gmra.mrb[0].mxu0 %v111
  %v199 = vpop.f32.mrb[0].mxu0
  %v200 = vadd.f32 0.0, %v199
  %v201 = vpop.f32.mrb[0].mxu0
  %202 = vdwg.mxu0
  %v203 = vld [vmem:[%s3] sm:$0x1]
  %v205 = vlaneseq
  %v206 = vshrl.u32 %v205, 7
  %v207 = vsub.s32 0, %v206
  %v208 = vrot.slane %v203, %v207
  %v210 = vadd.f32 %v208, %v195
  %v211 = vadd.f32 %v208, %v200
  %212 = vst [vmem:[%s4] sm:$0xff] %v210
  %213 = vst [vmem:[%s4 + $0x8] sm:$0xff] %v211
  // Predicated region
  $region18: #{lora_forward.1} parent=0 // pred_check
    _
  $region19: #{lora_forward.1} parent=0 // pred_check_branch
    %215 = sbr.rel (0) target = $region21
  $region20: #{lora_forward.1} parent=0 // pred_region
    _
  $region21: #{lora_forward.1} parent=0 // pred_fallthru
    _
  // Predicated region
  $region22: #{lora_forward.1} parent=0 // pred_check
    _
  $region23: #{lora_forward.1} parent=0 // pred_check_branch
    %217 = sbr.rel (0) target = $region25
  $region24: #{lora_forward.1} parent=0 // pred_region
    _
  $region25: #{lora_forward.1} parent=0 // pred_fallthru
    _

</llo_original>
